<compile_context>
chip_gen: v5e
topology: v5e:2x2
jax: 0.10.0
libtpu: 0.0.40
codegen_flags: <defaults>
</compile_context>

<pallas_src>
import functools

import jax
import jax.numpy as jnp
from jax.experimental import pallas as pl
from jax.experimental.pallas import tpu as pltpu

_LANES = 128
# ~4 MiB of payload per input block (per the perf review: 2-4 MiB blocks sit
# at ~86% of the HBM roofline; 3 arrays x 2 buffers x 4 MiB = 24 MiB live).
_MAX_BLOCK_BYTES = 4 * 1024 * 1024
# Explicit scoped-VMEM limit, safe on v5e/v6e (128 MiB) and v7x (64 MiB).
_VMEM_LIMIT_BYTES = 40 * 1024 * 1024


def _threshold_backward_kernel(grad_ref, self_ref, out_ref, *, threshold):
    # grad_ref / self_ref / out_ref: VMEM tiles (same block index map).
    # `threshold` is a compile-time constant (aten passes a concrete Scalar).
    g = grad_ref[...]
    x = self_ref[...]
    out_ref[...] = jnp.where(x > threshold, g, jnp.zeros_like(g))


def _sublane_multiple(dtype):
    # Native second-to-last tiling: 8 sublanes for 4-byte, 16 for 2-byte,
    # 32 for 1-byte dtypes (packed layouts).
    itemsize = jnp.dtype(dtype).itemsize
    return max(8, 32 // itemsize)


def threshold_backward(grad_output, self_, threshold):
    """JAX/Pallas equivalent of torch.ops.aten.threshold_backward.default."""
    assert grad_output.shape == self_.shape
    orig_shape = grad_output.shape
    dtype = grad_output.dtype
    # Static scalar (aten semantics). NaN > thr == False -> 0 matches aten.
    thr = float(threshold)

    total = grad_output.size
    if total == 0:
        return jnp.zeros(orig_shape, dtype=dtype)

    itemsize = jnp.dtype(dtype).itemsize
    sub = _sublane_multiple(dtype)
    # Rows per block: constant bytes across dtypes, rounded to the native
    # sublane multiple (8192 rows for f32, 16384 for bf16, 32768 for int8).
    cap_rows = max(sub, (_MAX_BLOCK_BYTES // (_LANES * itemsize)) // sub * sub)

    kernel = functools.partial(_threshold_backward_kernel, threshold=thr)
    cparams = pltpu.CompilerParams(
        # Row axis is fully independent -> megacore-shardable on v7x.
        dimension_semantics=("parallel",),
        vmem_limit_bytes=_VMEM_LIMIT_BYTES,
    )

    g_flat = jnp.ravel(grad_output)
    x_flat = jnp.ravel(self_)

    if total % _LANES == 0:
        # Aligned path: lane-dense (rows, 128) slab.
        rows = total // _LANES
        g2d = g_flat.reshape(rows, _LANES)
        x2d = x_flat.reshape(rows, _LANES)
        # Full-extent block if it fits the cap (legal for any `rows`),
        # otherwise cap_rows (a sublane multiple) with a masked final block.
        tile_rows = rows if rows <= cap_rows else cap_rows
        grid = (pl.cdiv(rows, tile_rows),)
        # NOTE: input_output_aliases={0: 0} would let grad_input reuse
        # grad_output's HBM buffer; skipped — no HBM-bytes savings and it
        # keeps the call boundary simple/safe in eager mode.
        out_flat = pl.pallas_call(
            kernel,
            out_shape=jax.ShapeDtypeStruct((rows, _LANES), dtype),
            grid=grid,
            in_specs=[
                pl.BlockSpec((tile_rows, _LANES), lambda i: (i, 0)),
                pl.BlockSpec((tile_rows, _LANES), lambda i: (i, 0)),
            ],
            out_specs=pl.BlockSpec((tile_rows, _LANES), lambda i: (i, 0)),
            compiler_params=cparams,
        )(g2d, x2d).reshape(-1)
    else:
        # Unaligned path: tile the flat 1-D array directly (masked final
        # block) instead of jnp.pad + slice, which cost ~2x HBM traffic.
        cap_elems = cap_rows * _LANES
        tile_elems = total if total <= cap_elems else cap_elems
        grid = (pl.cdiv(total, tile_elems),)
        out_flat = pl.pallas_call(
            kernel,
            out_shape=jax.ShapeDtypeStruct((total,), dtype),
            grid=grid,
            in_specs=[
                pl.BlockSpec((tile_elems,), lambda i: (i,)),
                pl.BlockSpec((tile_elems,), lambda i: (i,)),
            ],
            out_specs=pl.BlockSpec((tile_elems,), lambda i: (i,)),
            compiler_params=cparams,
        )(g_flat, x_flat)

    return out_flat.reshape(orig_shape)


if __name__ == "__main__":
    key = jax.random.PRNGKey(0)
    k1, k2 = jax.random.split(key)

    # NCHW input consistent with a typical threshold_backward call (ReLU grad).
    B, C, H, W = 2, 4, 16, 16
    grad_output = jax.random.normal(k1, (B, C, H, W), dtype=jnp.float32)
    self_input = jax.random.normal(k2, (B, C, H, W), dtype=jnp.float32)
    threshold = 0.0

    out = threshold_backward(grad_output, self_input, threshold)
    out = jax.block_until_ready(out)

    # Reference check (plain JAX)
    ref = jnp.where(self_input > threshold, grad_output, 0.0)
    assert out.shape == grad_output.shape
    assert out.dtype == grad_output.dtype
    assert jnp.allclose(out, ref), "mismatch vs reference"

    print("KERNEL_OK")
</pallas_src>

<mosaic_0001>
module attributes {stable_mosaic.version = 11 : i64} {
  func.func @_threshold_backward_kernel(%arg0: i32, %arg1: memref<16x128xf32, #tpu.memory_space<vmem>>, %arg2: memref<16x128xf32, #tpu.memory_space<vmem>>, %arg3: memref<16x128xf32, #tpu.memory_space<vmem>>) attributes {dimension_semantics = [#tpu.dimension_semantics<parallel>], iteration_bounds = array<i64: 1>, scalar_prefetch = 0 : i64, scratch_operands = 0 : i64, tpu.core_type = #tpu.core_type<tc>, window_params = [{transform_indices = @transform_0, window_bounds = array<i64: 16, 128>}, {transform_indices = @transform_1, window_bounds = array<i64: 16, 128>}, {transform_indices = @transform_2, window_bounds = array<i64: 16, 128>}]} {
    %c0 = arith.constant 0 : index
    %c0_0 = arith.constant 0 : index
    %0 = vector.load %arg1[%c0, %c0_0] : memref<16x128xf32, #tpu.memory_space<vmem>>, vector<16x128xf32>
    %c0_1 = arith.constant 0 : index
    %c0_2 = arith.constant 0 : index
    %1 = vector.load %arg2[%c0_1, %c0_2] : memref<16x128xf32, #tpu.memory_space<vmem>>, vector<16x128xf32>
    %cst = arith.constant 0.000000e+00 : f32
    %2 = vector.broadcast %cst : f32 to vector<16x128xf32>
    %3 = arith.cmpf ogt, %1, %2 : vector<16x128xf32>
    %cst_3 = arith.constant 0.000000e+00 : f32
    %4 = vector.broadcast %cst_3 : f32 to vector<16x128xf32>
    %5 = arith.select %3, %0, %4 : vector<16x128xi1>, vector<16x128xf32>
    %c0_4 = arith.constant 0 : index
    %c0_5 = arith.constant 0 : index
    %6 = vector.load %arg3[%c0_4, %c0_5] : memref<16x128xf32, #tpu.memory_space<vmem>>, vector<16x128xf32>
    tpu.vector_store %arg3[%c0_4, %c0_5], %5 {strides = array<i32>} : memref<16x128xf32, #tpu.memory_space<vmem>>, vector<16x128xf32>,
    return
  }
  func.func @transform_0(%arg0: i32) -> (i32, i32) {
    %c0_i32 = arith.constant 0 : i32
    %c0_i32_0 = arith.constant 0 : i32
    return %arg0, %c0_i32 : i32, i32
  }
  func.func @transform_1(%arg0: i32) -> (i32, i32) {
    %c0_i32 = arith.constant 0 : i32
    %c0_i32_0 = arith.constant 0 : i32
    return %arg0, %c0_i32 : i32, i32
  }
  func.func @transform_2(%arg0: i32) -> (i32, i32) {
    %c0_i32 = arith.constant 0 : i32
    %c0_i32_0 = arith.constant 0 : i32
    return %arg0, %c0_i32 : i32, i32
  }
}

</mosaic_0001>

<llo_original>
// kernel: tpu_custom_call.1
$region0: #{tpu_custom_call.1}
  #allocation0 [shape = 'u32[]', space=smem, size = 0x4, offset = 0x4, fixed_abs, tag = 'smem constant byte address 0x4 - core index']
  #allocation1 [shape = 'u32[72,128]{1,0:T(1,128)}', space=vmem, size = 0x9000, scoped, tag = 'internal scratch']
  %s0 = inlined_call_operand.hbm [shape: f32[16,128], index: 0, kind: input, shape index: {}]
  %s1 = inlined_call_operand.hbm [shape: f32[16,128], index: 1, kind: input, shape index: {}]
  %s2 = inlined_call_operand.hbm [shape: f32[16,128], index: 2, kind: output, shape index: {}]
  %s3 = sld [smem:[#allocation0]]
  $region26: #{tpu_custom_call.1} parent=0
    _
  %s5 = ssub.s32 1, %s3
  %s6 = scalar_select 0, %s5, %s3
  $region1: #{tpu_custom_call.1} parent=0
    #allocation2 [shape = 'u8[8192]{0}', space=vmem, size = 0x2000, scoped, tag = 'input window, operand 0, single buffered']
    #allocation3 [shape = 's32[1]{0}', space=sflag, size = 0x4, scoped, tag = 'scoped memory for tpu_custom_call.1']
    #allocation4 [shape = 's32[1]{0}', space=sflag, size = 0x4, scoped, tag = 'scoped memory for tpu_custom_call.1']
    #allocation5 [shape = 'u8[8192]{0}', space=vmem, size = 0x2000, scoped, tag = 'input window, operand 1, single buffered']
    #allocation6 [shape = 's32[1]{0}', space=sflag, size = 0x4, scoped, tag = 'scoped memory for tpu_custom_call.1']
    #allocation7 [shape = 'u8[8192]{0}', space=vmem, size = 0x2000, scoped, tag = 'output window, operand 0, single buffered']
    %7 = vsyncpa [#allocation3], 0
    %8 = vsyncpa [#allocation6], 0
    %9 = vsyncpa [#allocation4], 0
    // Predicated region
    $region2: #{tpu_custom_call.1} parent=1 // pred_check
      _
    $region3: #{tpu_custom_call.1} parent=1 // pred_check_branch
      %11 = sbr.rel (0) target = $region5
    $region4: #{tpu_custom_call.1} parent=1 // pred_region
      %13 = vsyncadd [#allocation3], 0
      %s14 = sshll.u32 %s0, 4
      %s15 = int_to_ptr.hbm [resolvable:$true] %s14
      %s16 = sshll.u32 [#allocation2], 4
      %s17 = int_to_ptr.vmem [resolvable:$true] %s16
      %22 = dma.hbm_to_vmem [thread:$0]  %s15, 256, %s17, [#allocation3], 128, 128, 8
    $region5: #{tpu_custom_call.1} parent=1 // pred_fallthru
      _
    // Predicated region
    $region6: #{tpu_custom_call.1} parent=1 // pred_check
      _
    $region7: #{tpu_custom_call.1} parent=1 // pred_check_branch
      %24 = sbr.rel (0) target = $region9
    $region8: #{tpu_custom_call.1} parent=1 // pred_region
      %26 = vsyncadd [#allocation6], 0
      %s27 = sshll.u32 %s1, 4
      %s28 = int_to_ptr.hbm [resolvable:$true] %s27
      %s29 = sshll.u32 [#allocation5], 4
      %s30 = int_to_ptr.vmem [resolvable:$true] %s29
      %35 = dma.hbm_to_vmem [thread:$0]  %s28, 256, %s30, [#allocation6], 128, 128, 8
    $region9: #{tpu_custom_call.1} parent=1 // pred_fallthru
      _
    // Predicated region
    $region10: #{tpu_custom_call.1} parent=1 // pred_check
      _
    $region11: #{tpu_custom_call.1} parent=1 // pred_check_branch
      %37 = sbr.rel (0) target = $region13
    $region12: #{tpu_custom_call.1} parent=1 // pred_region
      %39 = dma.done [#allocation3], 256
    $region13: #{tpu_custom_call.1} parent=1 // pred_fallthru
      _
    // Predicated region
    $region14: #{tpu_custom_call.1} parent=1 // pred_check
      _
    $region15: #{tpu_custom_call.1} parent=1 // pred_check_branch
      %41 = sbr.rel (0) target = $region17
    $region16: #{tpu_custom_call.1} parent=1 // pred_region
      %43 = dma.done [#allocation6], 256
    $region17: #{tpu_custom_call.1} parent=1 // pred_fallthru
      _
    %v44 = vld [vmem:[#allocation2] sm:$0xff]
    %v45 = vld [vmem:[#allocation2 + $0x8] sm:$0xff]
    %v46 = vld [vmem:[#allocation5] sm:$0xff]
    %v47 = vld [vmem:[#allocation5 + $0x8] sm:$0xff]
    %vm48 = vcmp.gt.f32.partialorder %v46, 0.0
    %vm49 = vcmp.gt.f32.partialorder %v47, 0.0
    %v50 = vsel %vm48, %v44, 0.0
    %v51 = vsel %vm49, %v45, 0.0
    %52 = vst [vmem:[#allocation7] sm:$0xff] %v50
    %53 = vst [vmem:[#allocation7 + $0x8] sm:$0xff] %v51
    // Predicated region
    $region18: #{tpu_custom_call.1} parent=1 // pred_check
      _
    $region19: #{tpu_custom_call.1} parent=1 // pred_check_branch
      %55 = sbr.rel (0) target = $region21
    $region20: #{tpu_custom_call.1} parent=1 // pred_region
      %57 = vsyncadd [#allocation4], 0
      %s58 = sshll.u32 [#allocation7], 4
      %s59 = int_to_ptr.vmem [resolvable:$true] %s58
      %s60 = sshll.u32 %s2, 4
      %s61 = int_to_ptr.hbm [resolvable:$true] %s60
      %66 = dma.vmem_to_hbm [thread:$0]  %s59, 256, %s61, [#allocation4], 128, 128, 8
    $region21: #{tpu_custom_call.1} parent=1 // pred_fallthru
      _
    // Predicated region
    $region22: #{tpu_custom_call.1} parent=1 // pred_check
      _
    $region23: #{tpu_custom_call.1} parent=1 // pred_check_branch
      %68 = sbr.rel (0) target = $region25
    $region24: #{tpu_custom_call.1} parent=1 // pred_region
      %70 = dma.done [#allocation4], 256
    $region25: #{tpu_custom_call.1} parent=1 // pred_fallthru
      _
    %71 = vsyncpa [#allocation3], 1
    %72 = vsyncpa [#allocation6], 1
    %73 = vsyncpa [#allocation4], 1

</llo_original>
